<compile_context>
chip_gen: v6e
topology: v6e:2x2x1
jax: 0.10.0
libtpu: 0.0.40
codegen_flags: <defaults>
</compile_context>

<pallas_src>
import functools

import jax
import jax.numpy as jnp
from jax.experimental import pallas as pl
from jax.experimental.pallas import tpu as pltpu


# ---------------------------------------------------------------------------
# Tile / VMEM budget selection
# ---------------------------------------------------------------------------
def _round_up(x, m):
    return ((x + m - 1) // m) * m


def _vmem_params():
    """Return (target seq-tile bytes, vmem_limit_bytes) per TPU generation."""
    try:
        vmem_bytes = pltpu.get_tpu_info().vmem_capacity_bytes
    except Exception:  # unknown chip / interpret mode: be conservative
        vmem_bytes = None
    if vmem_bytes is not None and vmem_bytes > (64 << 20):
        return 12 << 20, 64 << 20          # v5e / v6e: 128 MiB physical VMEM
    return 6 << 20, 40 << 20               # v7x (or unknown): 64 MiB per TC


def _choose_tiles(B, N, D, itemsize, target_bytes):
    """Pick (b_tile, d_tile, n_tile) for the (B, D, N) grid."""
    # Batch tile: second-to-last dim of the unmasked output block -> must be a
    # multiple of 8 or equal the (padded) batch dim.
    b_tile = B if B <= 8 else 8

    # D tile: last dim of the seq / output blocks -> multiple of 128 or full D.
    # Split when (a) even a 128-deep N slab would blow the tile budget, or
    # (b) the batch axis alone gives <2 parallel iterations (feed both v7x TCs).
    d_tile = D
    if D % 128 == 0 and D > 128:
        need_core_split = (_round_up(B, b_tile) // b_tile) < 2

        def too_wide(d):
            return b_tile * d * itemsize * 128 > target_bytes // 2

        while d_tile % 256 == 0 and (too_wide(d_tile)
                                     or (need_core_split and d_tile == D)):
            d_tile //= 2

    # N tile (reduction axis, last grid dim): either the whole sequence in one
    # block (block dim == array dim -> no alignment constraint, no padding) or
    # a multiple of 128 (lane-aligned for the [B,1,N] mask's last dim and
    # sublane-aligned for any seq dtype: 128 covers f32/bf16/int8 packing).
    row_bytes = max(1, b_tile * d_tile * itemsize)
    if N * row_bytes <= target_bytes:
        n_tile = N
    else:
        n_tile = max(128, (target_bytes // row_bytes) // 128 * 128)
    return b_tile, d_tile, n_tile


# ---------------------------------------------------------------------------
# Kernels
# ---------------------------------------------------------------------------
def _readout_masked_kernel(seq_ref, msk_ref, inv_ref, o_ref, acc_ref):
    # seq_ref: (b_tile, n_tile, d_tile)     msk_ref: (b_tile, 1, n_tile)
    # inv_ref: SMEM (1, 1) scalar = 1 / (N * sum(msk))
    # o_ref:   (b_tile, 1, d_tile) output block, resident across the N axis
    # acc_ref: (b_tile, 1, d_tile) float32 accumulator scratch
    n = pl.program_id(2)

    @pl.when(n == 0)
    def _():
        acc_ref[...] = jnp.zeros_like(acc_ref)

    # Mask stays lane-dense (N on the 128-lane axis); contraction over N is a
    # batched (1 x n) @ (n x d) matmul on the otherwise-idle MXU.
    m = msk_ref[...].astype(seq_ref.dtype)
    acc_ref[...] += jnp.einsum(
        "bqn,bnd->bqd", m, seq_ref[...],
        preferred_element_type=jnp.float32,
        precision=jax.lax.Precision.HIGHEST)

    @pl.when(n == pl.num_programs(2) - 1)
    def _():
        o_ref[...] = (acc_ref[...] * inv_ref[0, 0]).astype(o_ref.dtype)


def _readout_mean_kernel(seq_ref, o_ref, acc_ref, *, inv_n):
    # Unmasked mean; inv_n = 1/N_original (zero-padded rows contribute nothing).
    n = pl.program_id(2)

    @pl.when(n == 0)
    def _():
        acc_ref[...] = jnp.zeros_like(acc_ref)

    acc_ref[...] += jnp.sum(seq_ref[...].astype(jnp.float32), axis=1)

    @pl.when(n == pl.num_programs(2) - 1)
    def _():
        o_ref[...] = (acc_ref[...] * inv_n).astype(o_ref.dtype)


# ---------------------------------------------------------------------------
# Wrapper
# ---------------------------------------------------------------------------
def readout(seq, msk=None, *, b_tile=None, d_tile=None, n_tile=None):
    """Pallas implementation of Readout.forward(seq, msk).

    seq: [B, N, D] float array
    msk: [B, N] float/bool array or None
    returns: [B, D]
    """
    B, N, D = seq.shape
    itemsize = jnp.dtype(seq.dtype).itemsize
    target_bytes, vmem_limit = _vmem_params()
    bt, dt, nt = _choose_tiles(B, N, D, itemsize, target_bytes)
    if b_tile is not None:
        bt = b_tile
    if d_tile is not None:
        dt = d_tile
    if n_tile is not None:
        nt = n_tile
    assert D % dt == 0, (D, dt)

    # Zero-pad non-divisor B / N (exact: normalizers use the original N and
    # padded mask rows are zero).  Skipped entirely for aligned shapes.
    B_pad = _round_up(B, bt)
    N_pad = N if nt == N else _round_up(N, nt)
    seq_p = seq
    if (B_pad, N_pad) != (B, N):
        seq_p = jnp.pad(seq, ((0, B_pad - B), (0, N_pad - N), (0, 0)))

    grid = (B_pad // bt, D // dt, N_pad // nt)   # reduction axis (N) last
    compiler_params = pltpu.CompilerParams(
        dimension_semantics=("parallel", "parallel", "arbitrary"),
        vmem_limit_bytes=vmem_limit)
    # Default double-buffering; bump to pl.Buffered(3) only if xprof shows
    # exposed DMA at N-step boundaries (costs one extra tile of VMEM on v7x).
    seq_spec = pl.BlockSpec((bt, nt, dt), lambda b, d, n: (b, n, d))

    if msk is None:
        kernel = functools.partial(_readout_mean_kernel, inv_n=1.0 / N)
        out = pl.pallas_call(
            kernel,
            out_shape=jax.ShapeDtypeStruct((B_pad, D), seq.dtype),
            grid_spec=pltpu.PrefetchScalarGridSpec(
                num_scalar_prefetch=0,
                grid=grid,
                in_specs=[seq_spec],
                out_specs=pl.BlockSpec((bt, dt), lambda b, d, n: (b, d)),
                scratch_shapes=[pltpu.VMEM((bt, dt), jnp.float32)],
            ),
            compiler_params=compiler_params,
        )(seq_p)
        return out[:B]

    # Global normalizer (matches the PyTorch module: sum over the WHOLE mask),
    # computed once outside the kernel as a tiny XLA reduction.
    inv_denom = (1.0 / (jnp.float32(N) * jnp.sum(msk.astype(jnp.float32)))
                 ).reshape(1, 1)

    msk_p = msk
    if (B_pad, N_pad) != (B, N):
        msk_p = jnp.pad(msk, ((0, B_pad - B), (0, N_pad - N)))
    msk_lane = msk_p.reshape(B_pad, 1, N_pad)    # lane-dense: N on the lane axis

    out = pl.pallas_call(
        _readout_masked_kernel,
        out_shape=jax.ShapeDtypeStruct((B_pad, 1, D), seq.dtype),
        grid_spec=pltpu.PrefetchScalarGridSpec(
            num_scalar_prefetch=0,
            grid=grid,
            in_specs=[
                seq_spec,
                pl.BlockSpec((bt, 1, nt), lambda b, d, n: (b, 0, n)),
                pl.BlockSpec(memory_space=pltpu.MemorySpace.SMEM),
            ],
            out_specs=pl.BlockSpec((bt, 1, dt), lambda b, d, n: (b, 0, d)),
            scratch_shapes=[pltpu.VMEM((bt, 1, dt), jnp.float32)],
        ),
        compiler_params=compiler_params,
    )(seq_p, msk_lane, inv_denom)
    return out.reshape(B_pad, D)[:B]


def _readout_ref(seq, msk=None):
    # Pure-JAX reference mirroring the PyTorch module exactly.
    if msk is None:
        return jnp.mean(seq, axis=1)
    m = msk[..., None]
    return jnp.mean(seq * m, axis=1) / jnp.sum(m)


if __name__ == "__main__":
    key = jax.random.PRNGKey(0)
    k1, k2, k3, k4 = jax.random.split(key, 4)

    # Case 1: small shapes matching the module's forward (single-tile grid).
    B, N, D = 2, 8, 32
    seq = jax.random.normal(k1, (B, N, D), dtype=jnp.float32)
    msk = (jax.random.uniform(k2, (B, N)) > 0.3).astype(jnp.float32)
    out_m = readout(seq, msk)
    out_u = readout(seq, None)
    jax.block_until_ready((out_m, out_u))
    assert out_m.shape == (B, D) and out_u.shape == (B, D)
    assert jnp.allclose(out_m, _readout_ref(seq, msk), atol=1e-5, rtol=1e-4)
    assert jnp.allclose(out_u, _readout_ref(seq, None), atol=1e-5, rtol=1e-4)

    # Case 2: multi-step N reduction + parallel D split (grid (1, 2, 4)),
    # exercising the f32 accumulator init/finalize across grid iterations.
    B2, N2, D2 = 4, 512, 256
    seq2 = jax.random.normal(k3, (B2, N2, D2), dtype=jnp.float32)
    msk2 = (jax.random.uniform(k2, (B2, N2)) > 0.5).astype(jnp.float32)
    out2_m = readout(seq2, msk2, n_tile=128, d_tile=128)
    out2_u = readout(seq2, None, n_tile=128, d_tile=128)
    jax.block_until_ready((out2_m, out2_u))
    assert jnp.allclose(out2_m, _readout_ref(seq2, msk2), atol=1e-5, rtol=1e-4)
    assert jnp.allclose(out2_u, _readout_ref(seq2, None), atol=1e-5, rtol=1e-4)

    # Case 3: non-divisor N (zero-padded tail tile) with odd batch size.
    B3, N3, D3 = 5, 300, 128
    seq3 = jax.random.normal(k4, (B3, N3, D3), dtype=jnp.float32)
    msk_3 = (jax.random.uniform(k2, (B3, N3)) > 0.4).astype(jnp.float32)
    out3_m = readout(seq3, msk_3, n_tile=128)
    out3_u = readout(seq3, None, n_tile=128)
    jax.block_until_ready((out3_m, out3_u))
    assert jnp.allclose(out3_m, _readout_ref(seq3, msk_3), atol=1e-5, rtol=1e-4)
    assert jnp.allclose(out3_u, _readout_ref(seq3, None), atol=1e-5, rtol=1e-4)

    print("KERNEL_OK")
</pallas_src>

<mosaic_0001>
module attributes {stable_mosaic.version = 11 : i64} {
  func.func @_readout_masked_kernel(%arg0: i32, %arg1: i32, %arg2: i32, %arg3: memref<2x8x32xf32, #tpu.memory_space<vmem>>, %arg4: memref<2x1x8xf32, #tpu.memory_space<vmem>>, %arg5: memref<1x1xf32, #tpu.memory_space<smem>>, %arg6: memref<2x1x32xf32, #tpu.memory_space<vmem>>, %arg7: memref<2x1x32xf32, #tpu.memory_space<vmem>>) attributes {dimension_semantics = [#tpu.dimension_semantics<parallel>, #tpu.dimension_semantics<parallel>, #tpu.dimension_semantics<arbitrary>], iteration_bounds = array<i64: 1, 1, 1>, scalar_prefetch = 0 : i64, scratch_operands = 1 : i64, tpu.core_type = #tpu.core_type<tc>, window_params = [{transform_indices = @transform_0, window_bounds = array<i64: 2, 8, 32>}, {transform_indices = @transform_1, window_bounds = array<i64: 2, 1, 8>}, {transform_indices = @transform_2, window_bounds = array<i64: 1, 1>}, {transform_indices = @transform_3, window_bounds = array<i64: 2, 1, 32>}]} {
    %c0_i32 = arith.constant 0 : i32
    %0 = arith.cmpi eq, %arg2, %c0_i32 : i32
    %1 = arith.extui %0 : i1 to i32
    %c0_i32_0 = arith.constant 0 : i32
    %2 = arith.cmpi ne, %1, %c0_i32_0 : i32
    scf.if %2 {
      %cst_14 = arith.constant 0.000000e+00 : f32
      %12 = vector.broadcast %cst_14 : f32 to vector<2x1x32xf32>
      %c0_15 = arith.constant 0 : index
      %c0_16 = arith.constant 0 : index
      %c0_17 = arith.constant 0 : index
      %13 = vector.load %arg7[%c0_15, %c0_16, %c0_17] : memref<2x1x32xf32, #tpu.memory_space<vmem>>, vector<2x1x32xf32>
      tpu.vector_store %arg7[%c0_15, %c0_16, %c0_17], %12 {strides = array<i32>} : memref<2x1x32xf32, #tpu.memory_space<vmem>>, vector<2x1x32xf32>,
    } else {
    }
    %c0 = arith.constant 0 : index
    %c0_1 = arith.constant 0 : index
    %c0_2 = arith.constant 0 : index
    %3 = vector.load %arg4[%c0, %c0_1, %c0_2] : memref<2x1x8xf32, #tpu.memory_space<vmem>>, vector<2x1x8xf32>
    %c0_3 = arith.constant 0 : index
    %c0_4 = arith.constant 0 : index
    %c0_5 = arith.constant 0 : index
    %4 = vector.load %arg7[%c0_3, %c0_4, %c0_5] : memref<2x1x32xf32, #tpu.memory_space<vmem>>, vector<2x1x32xf32>
    %c0_6 = arith.constant 0 : index
    %c0_7 = arith.constant 0 : index
    %c0_8 = arith.constant 0 : index
    %5 = vector.load %arg3[%c0_6, %c0_7, %c0_8] : memref<2x8x32xf32, #tpu.memory_space<vmem>>, vector<2x8x32xf32>
    "tpu.trace_start"() <{level = 10 : i32, message = "bqn,bnd->bqd"}> : () -> ()
    %cst = arith.constant dense<0.000000e+00> : vector<2x1x32xf32>
    %6 = tpu.matmul %3, %5, %cst {dimension_numbers = #tpu.dot_dimension_numbers<[2], [1], [1], [2], [0, 0, 0, 1, 1, 2], [0], [0]>, precision = #tpu.contract_precision<fp32>} : vector<2x1x8xf32>, vector<2x8x32xf32>, vector<2x1x32xf32> -> vector<2x1x32xf32>
    "tpu.trace_stop"() : () -> ()
    %7 = arith.addf %4, %6 : vector<2x1x32xf32>
    %c0_9 = arith.constant 0 : index
    %c0_10 = arith.constant 0 : index
    %c0_11 = arith.constant 0 : index
    %8 = vector.load %arg7[%c0_9, %c0_10, %c0_11] : memref<2x1x32xf32, #tpu.memory_space<vmem>>, vector<2x1x32xf32>
    tpu.vector_store %arg7[%c0_9, %c0_10, %c0_11], %7 {strides = array<i32>} : memref<2x1x32xf32, #tpu.memory_space<vmem>>, vector<2x1x32xf32>,
    %c0_i32_12 = arith.constant 0 : i32
    %9 = arith.cmpi eq, %arg2, %c0_i32_12 : i32
    %10 = arith.extui %9 : i1 to i32
    %c0_i32_13 = arith.constant 0 : i32
    %11 = arith.cmpi ne, %10, %c0_i32_13 : i32
    scf.if %11 {
      %c0_14 = arith.constant 0 : index
      %c0_15 = arith.constant 0 : index
      %c0_16 = arith.constant 0 : index
      %12 = vector.load %arg7[%c0_14, %c0_15, %c0_16] : memref<2x1x32xf32, #tpu.memory_space<vmem>>, vector<2x1x32xf32>
      %c0_17 = arith.constant 0 : index
      %c0_18 = arith.constant 0 : index
      %13 = memref.load %arg5[%c0_17, %c0_18] : memref<1x1xf32, #tpu.memory_space<smem>>
      %14 = vector.broadcast %13 : f32 to vector<2x1x32xf32>
      %15 = arith.mulf %12, %14 : vector<2x1x32xf32>
      %c0_19 = arith.constant 0 : index
      %c0_20 = arith.constant 0 : index
      %c0_21 = arith.constant 0 : index
      %16 = vector.load %arg6[%c0_19, %c0_20, %c0_21] : memref<2x1x32xf32, #tpu.memory_space<vmem>>, vector<2x1x32xf32>
      tpu.vector_store %arg6[%c0_19, %c0_20, %c0_21], %15 {strides = array<i32>} : memref<2x1x32xf32, #tpu.memory_space<vmem>>, vector<2x1x32xf32>,
    } else {
    }
    return
  }
  func.func @transform_0(%arg0: i32, %arg1: i32, %arg2: i32) -> (i32, i32, i32) {
    %c0_i32 = arith.constant 0 : i32
    return %arg0, %arg2, %arg1 : i32, i32, i32
  }
  func.func @transform_1(%arg0: i32, %arg1: i32, %arg2: i32) -> (i32, i32, i32) {
    %c0_i32 = arith.constant 0 : i32
    %c0_i32_0 = arith.constant 0 : i32
    return %arg0, %c0_i32, %arg2 : i32, i32, i32
  }
  func.func @transform_2(%arg0: i32, %arg1: i32, %arg2: i32) -> (i32, i32) {
    %c0_i32 = arith.constant 0 : i32
    %c0_i32_0 = arith.constant 0 : i32
    %c0_i32_1 = arith.constant 0 : i32
    return %c0_i32, %c0_i32_0 : i32, i32
  }
  func.func @transform_3(%arg0: i32, %arg1: i32, %arg2: i32) -> (i32, i32, i32) {
    %c0_i32 = arith.constant 0 : i32
    %c0_i32_0 = arith.constant 0 : i32
    return %arg0, %c0_i32, %arg1 : i32, i32, i32
  }
}

</mosaic_0001>

<llo_original>
// kernel: tpu_custom_call.1
$region0: #{tpu_custom_call.1}
  #allocation0 [shape = 'u32[]', space=smem, size = 0x4, offset = 0x4, fixed_abs, tag = 'smem constant byte address 0x4 - core index']
  #allocation1 [shape = 'u32[144,128]{1,0:T(1,128)}', space=vmem, size = 0x12000, scoped, tag = 'internal scratch']
  #allocation2 [shape = 'f32[2,1,32]{2,1,0:T(1,128)}', space=vmem, size = 0x400, scoped, tag = 'scratch operand']
  #allocation3 [shape = 'f32[1,1]{1,0:T(1,128)S(6)}', space=smem, size = 0x200, scoped, tag = 'scoped memory for tpu_custom_call.1']
  %s0 = inlined_call_operand.hbm [shape: f32[2,8,32], index: 0, kind: input, shape index: {}]
  %s1 = inlined_call_operand.vmem [shape: f32[2,1,8], index: 1, kind: input, shape index: {}]
  %s2 = inlined_call_operand.<no memory space> [shape: f32[1,1], index: 2, kind: input, shape index: {}]
  %s3 = inlined_call_operand.hbm [shape: f32[2,1,32], index: 3, kind: output, shape index: {}]
  %s4 = sld [smem:[#allocation0]]
  $region34: #{tpu_custom_call.1} parent=0
    _
  %s6 = ssub.s32 1, %s4
  %s7 = scalar_select 0, %s6, %s4
  %8 = sst [smem:[#allocation3]] %s2
  $region1: #{tpu_custom_call.1} parent=0
    #allocation4 [shape = 'u8[8192]{0}', space=vmem, size = 0x2000, scoped, tag = 'input window, operand 0, single buffered']
    #allocation5 [shape = 's32[1]{0}', space=sflag, size = 0x4, scoped, tag = 'scoped memory for tpu_custom_call.1']
    #allocation6 [shape = 's32[1]{0}', space=sflag, size = 0x4, scoped, tag = 'scoped memory for tpu_custom_call.1']
    #allocation7 [shape = 'u8[1024]{0}', space=vmem, size = 0x400, scoped, tag = 'output window, operand 0, single buffered']
    %9 = vsyncpa [#allocation5], 0
    %10 = vsyncpa [#allocation6], 0
    // Predicated region
    $region2: #{tpu_custom_call.1} parent=1 // pred_check
      _
    $region3: #{tpu_custom_call.1} parent=1 // pred_check_branch
      %12 = sbr.rel (0) target = $region5
    $region4: #{tpu_custom_call.1} parent=1 // pred_region
      %s14 = ssub.s32 256, 256
      %15 = vsyncadd [#allocation5], %s14
      %s16 = sshll.u32 [#allocation4], 4
      %s17 = int_to_ptr.vmem [resolvable:$true] %s16
      %22 = dma.hbm_to_vmem [thread:$0]  %s0, 256, %s17, [#allocation5], 128, 128, 8
    $region5: #{tpu_custom_call.1} parent=1 // pred_fallthru
      _
    // Predicated region
    $region6: #{tpu_custom_call.1} parent=1 // pred_check
      _
    $region7: #{tpu_custom_call.1} parent=1 // pred_check_branch
      %24 = sbr.rel (0) target = $region9
    $region8: #{tpu_custom_call.1} parent=1 // pred_region
      _
    $region9: #{tpu_custom_call.1} parent=1 // pred_fallthru
      _
    // Predicated region
    $region10: #{tpu_custom_call.1} parent=1 // pred_check
      _
    $region11: #{tpu_custom_call.1} parent=1 // pred_check_branch
      %26 = sbr.rel (0) target = $region13
    $region12: #{tpu_custom_call.1} parent=1 // pred_region
      _
    $region13: #{tpu_custom_call.1} parent=1 // pred_fallthru
      _
    // Predicated region
    $region14: #{tpu_custom_call.1} parent=1 // pred_check
      _
    $region15: #{tpu_custom_call.1} parent=1 // pred_check_branch
      %28 = sbr.rel (0) target = $region17
    $region16: #{tpu_custom_call.1} parent=1 // pred_region
      %29 = dma.done [#allocation5], 256
    $region17: #{tpu_custom_call.1} parent=1 // pred_fallthru
      _
    %p30 = scmp.eq.s32.totalorder 0, 0
    // Predicated region
    $region18: #{tpu_custom_call.1} parent=1 // pred_check
      %p31 = pneg %p30
    $region19: #{tpu_custom_call.1} parent=1 // pred_check_branch
      %33 = sbr.rel (%p31) target = $region21
    $region20: #{tpu_custom_call.1} parent=1 // pred_region
      %vm34 = vcmask 253952
      %35 = vst.msk [vmem:[#allocation2] sm:$0x1] %vm34, 0.0
      %36 = vst.msk [vmem:[#allocation2 + $0x1] sm:$0x1] %vm34, 0.0
    $region21: #{tpu_custom_call.1} parent=1 // pred_fallthru
      _
    %v37 = vld [vmem:[%s1] sm:$0x1]
    %v38 = vld [vmem:[%s1 + $0x1] sm:$0x1]
    %v39 = vld [vmem:[#allocation2] sm:$0x1]
    %v40 = vld [vmem:[#allocation2 + $0x1] sm:$0x1]
    %v41 = vld [vmem:[#allocation4] sm:$0xff]
    %v42 = vld [vmem:[#allocation4 + $0x8] sm:$0xff]
    %vm43 = vcmask 64512
    %v45 = vsel %vm43, %v37, 0
    %47 = vmatprep.subr.mxu0 0.0
    %48 = vmatpush1.msra.mxu0 0.0
    %49 = vmatprep.subr.mxu0 0.0
    %50 = vmatpush1.msra.mxu0 0.0
    %51 = vmatprep.subr.mxu0 0.0
    %52 = vmatpush1.msra.mxu0 0.0
    %53 = vmatprep.subr.mxu0 0.0
    %54 = vmatpush1.msra.mxu0 0.0
    %55 = vmatprep.subr.mxu0 0.0
    %56 = vmatpush1.msra.mxu0 0.0
    %57 = vmatprep.subr.mxu0 0.0
    %58 = vmatpush1.msra.mxu0 0.0
    %59 = vmatprep.subr.mxu0 0.0
    %60 = vmatpush1.msra.mxu0 0.0
    %61 = vmatprep.subr.mxu0 0.0
    %62 = vmatpush1.msra.mxu0 0.0
    %63 = vmatprep.subr.mxu0 0.0
    %64 = vmatpush1.msra.mxu0 0.0
    %65 = vmatprep.subr.mxu0 0.0
    %66 = vmatpush1.msra.mxu0 0.0
    %67 = vmatprep.subr.mxu0 0.0
    %68 = vmatpush1.msra.mxu0 0.0
    %69 = vmatprep.subr.mxu0 0.0
    %70 = vmatpush1.msra.mxu0 0.0
    %71 = vmatprep.subr.mxu0 0.0
    %72 = vmatpush1.msra.mxu0 0.0
    %73 = vmatprep.subr.mxu0 0.0
    %74 = vmatpush1.msra.mxu0 0.0
    %75 = vmatprep.subr.mxu0 0.0
    %76 = vmatpush1.msra.mxu0 0.0
    %77 = vmatprep.subr.mxu0 0.0
    %v78 = vand.u32 %v41, 4294901760
    %79 = vmatpush1.msra.mxu0 %v78
    %80 = vmatprep.subr.mxu0 0.0
    %81 = vmatpush2.msra.mxu0 0.0
    %82 = vmatprep.subr.mxu0 0.0
    %83 = vmatpush2.msra.mxu0 0.0
    %84 = vmatprep.subr.mxu0 0.0
    %85 = vmatpush2.msra.mxu0 0.0
    %86 = vmatprep.subr.mxu0 0.0
    %87 = vmatpush2.msra.mxu0 0.0
    %88 = vmatprep.subr.mxu0 0.0
    %89 = vmatpush2.msra.mxu0 0.0
    %90 = vmatprep.subr.mxu0 0.0
    %91 = vmatpush2.msra.mxu0 0.0
    %92 = vmatprep.subr.mxu0 0.0
    %93 = vmatpush2.msra.mxu0 0.0
    %94 = vmatprep.subr.mxu0 0.0
    %95 = vmatpush2.msra.mxu0 0.0
    %96 = vmatprep.subr.mxu0 0.0
    %97 = vmatpush2.msra.mxu0 0.0
    %98 = vmatprep.subr.mxu0 0.0
    %99 = vmatpush2.msra.mxu0 0.0
    %100 = vmatprep.subr.mxu0 0.0
    %101 = vmatpush2.msra.mxu0 0.0
    %102 = vmatprep.subr.mxu0 0.0
    %103 = vmatpush2.msra.mxu0 0.0
    %104 = vmatprep.subr.mxu0 0.0
    %105 = vmatpush2.msra.mxu0 0.0
    %106 = vmatprep.subr.mxu0 0.0
    %107 = vmatpush2.msra.mxu0 0.0
    %108 = vmatprep.subr.mxu0 0.0
    %109 = vmatpush2.msra.mxu0 0.0
    %110 = vmatprep.subr.mxu0 0.0
    %111 = vmatpush2.msra.mxu0 0.0
    %112 = vmatprep.mubr.f32.mxu0 0.0
    %v113 = vand.u32 %v45, 4294901760
    %v114 = vsub.f32 %v45, %v113
    %v115 = vand.u32 %v114, 4294901760
    %v116 = vsub.f32 %v114, %v115
    %v117 = vand.u32 %v116, 4294901760
    %118 = vmatmul.mubr.f32.gmra.mxu0 %v117
    %v119 = vpop.f32.mrf.mxu0
    %v120 = vadd.f32 0.0, %v119
    %v121 = vpop.f32.mrf.mxu0
    %122 = vdwg.mxu0
    %123 = vmatprep.subr.mxu0 0.0
    %124 = vmatpush1.msra.mxu0 0.0
    %125 = vmatprep.subr.mxu0 0.0
    %126 = vmatpush1.msra.mxu0 0.0
    %127 = vmatprep.subr.mxu0 0.0
    %128 = vmatpush1.msra.mxu0 0.0
    %129 = vmatprep.subr.mxu0 0.0
    %130 = vmatpush1.msra.mxu0 0.0
    %131 = vmatprep.subr.mxu0 0.0
    %132 = vmatpush1.msra.mxu0 0.0
    %133 = vmatprep.subr.mxu0 0.0
    %134 = vmatpush1.msra.mxu0 0.0
    %135 = vmatprep.subr.mxu0 0.0
    %136 = vmatpush1.msra.mxu0 0.0
    %137 = vmatprep.subr.mxu0 0.0
    %138 = vmatpush1.msra.mxu0 0.0
    %139 = vmatprep.subr.mxu0 0.0
    %140 = vmatpush1.msra.mxu0 0.0
    %141 = vmatprep.subr.mxu0 0.0
    %142 = vmatpush1.msra.mxu0 0.0
    %143 = vmatprep.subr.mxu0 0.0
    %144 = vmatpush1.msra.mxu0 0.0
    %145 = vmatprep.subr.mxu0 0.0
    %146 = vmatpush1.msra.mxu0 0.0
    %147 = vmatprep.subr.mxu0 0.0
    %148 = vmatpush1.msra.mxu0 0.0
    %149 = vmatprep.subr.mxu0 0.0
    %150 = vmatpush1.msra.mxu0 0.0
    %151 = vmatprep.subr.mxu0 0.0
    %152 = vmatpush1.msra.mxu0 0.0
    %153 = vmatprep.subr.mxu0 0.0
    %v154 = vand.u32 %v41, 4294901760
    %v155 = vsub.f32 %v41, %v154
    %v156 = vand.u32 %v155, 4294901760
    %v157 = vsub.f32 %v155, %v156
    %v158 = vand.u32 %v157, 4294901760
    %159 = vmatpush1.msra.mxu0 %v158
    %160 = vmatprep.subr.mxu0 0.0
    %161 = vmatpush2.msra.mxu0 0.0
    %162 = vmatprep.subr.mxu0 0.0
    %163 = vmatpush2.msra.mxu0 0.0
    %164 = vmatprep.subr.mxu0 0.0
    %165 = vmatpush2.msra.mxu0 0.0
    %166 = vmatprep.subr.mxu0 0.0
    %167 = vmatpush2.msra.mxu0 0.0
    %168 = vmatprep.subr.mxu0 0.0
    %169 = vmatpush2.msra.mxu0 0.0
    %170 = vmatprep.subr.mxu0 0.0
    %171 = vmatpush2.msra.mxu0 0.0
    %172 = vmatprep.subr.mxu0 0.0
    %173 = vmatpush2.msra.mxu0 0.0
    %174 = vmatprep.subr.mxu0 0.0
    %175 = vmatpush2.msra.mxu0 0.0
    %176 = vmatprep.subr.mxu0 0.0
    %177 = vmatpush2.msra.mxu0 0.0
    %178 = vmatprep.subr.mxu0 0.0
    %179 = vmatpush2.msra.mxu0 0.0
    %180 = vmatprep.subr.mxu0 0.0
    %181 = vmatpush2.msra.mxu0 0.0
    %182 = vmatprep.subr.mxu0 0.0
    %183 = vmatpush2.msra.mxu0 0.0
    %184 = vmatprep.subr.mxu0 0.0
    %185 = vmatpush2.msra.mxu0 0.0
    %186 = vmatprep.subr.mxu0 0.0
    %187 = vmatpush2.msra.mxu0 0.0
    %188 = vmatprep.subr.mxu0 0.0
    %189 = vmatpush2.msra.mxu0 0.0
    %190 = vmatprep.subr.mxu0 0.0
    %191 = vmatpush2.msra.mxu0 0.0
    %192 = vmatprep.mubr.f32.mxu0 0.0
    %v193 = vand.u32 %v45, 4294901760
    %194 = vmatmul.mubr.f32.gmra.mxu0 %v193
    %v195 = vpop.f32.mrf.mxu0
    %v196 = vadd.f32 %v120, %v195
    %v197 = vpop.f32.mrf.mxu0
    %198 = vdwg.mxu0
    %199 = vmatprep.subr.mxu0 0.0
    %200 = vmatpush1.msra.mxu0 0.0
    %201 = vmatprep.subr.mxu0 0.0
    %202 = vmatpush1.msra.mxu0 0.0
    %203 = vmatprep.subr.mxu0 0.0
    %204 = vmatpush1.msra.mxu0 0.0
    %205 = vmatprep.subr.mxu0 0.0
    %206 = vmatpush1.msra.mxu0 0.0
    %207 = vmatprep.subr.mxu0 0.0
    %208 = vmatpush1.msra.mxu0 0.0
    %209 = vmatprep.subr.mxu0 0.0
    %210 = vmatpush1.msra.mxu0 0.0
    %211 = vmatprep.subr.mxu0 0.0
    %212 = vmatpush1.msra.mxu0 0.0
    %213 = vmatprep.subr.mxu0 0.0
    %214 = vmatpush1.msra.mxu0 0.0
    %215 = vmatprep.subr.mxu0 0.0
    %216 = vmatpush1.msra.mxu0 0.0
    %217 = vmatprep.subr.mxu0 0.0
    %218 = vmatpush1.msra.mxu0 0.0
    %219 = vmatprep.subr.mxu0 0.0
    %220 = vmatpush1.msra.mxu0 0.0
    %221 = vmatprep.subr.mxu0 0.0
    %222 = vmatpush1.msra.mxu0 0.0
    %223 = vmatprep.subr.mxu0 0.0
    %224 = vmatpush1.msra.mxu0 0.0
    %225 = vmatprep.subr.mxu0 0.0
    %226 = vmatpush1.msra.mxu0 0.0
    %227 = vmatprep.subr.mxu0 0.0
    %228 = vmatpush1.msra.mxu0 0.0
    %229 = vmatprep.subr.mxu0 0.0
    %v230 = vand.u32 %v41, 4294901760
    %v231 = vsub.f32 %v41, %v230
    %232 = vmatpush1.msra.mxu0 %v231
    %233 = vmatprep.subr.mxu0 0.0
    %234 = vmatpush2.msra.mxu0 0.0
    %235 = vmatprep.subr.mxu0 0.0
    %236 = vmatpush2.msra.mxu0 0.0
    %237 = vmatprep.subr.mxu0 0.0
    %238 = vmatpush2.msra.mxu0 0.0
    %239 = vmatprep.subr.mxu0 0.0
    %240 = vmatpush2.msra.mxu0 0.0
    %241 = vmatprep.subr.mxu0 0.0
    %242 = vmatpush2.msra.mxu0 0.0
    %243 = vmatprep.subr.mxu0 0.0
    %244 = vmatpush2.msra.mxu0 0.0
    %245 = vmatprep.subr.mxu0 0.0
    %246 = vmatpush2.msra.mxu0 0.0
    %247 = vmatprep.subr.mxu0 0.0
    %248 = vmatpush2.msra.mxu0 0.0
    %249 = vmatprep.subr.mxu0 0.0
    %250 = vmatpush2.msra.mxu0 0.0
    %251 = vmatprep.subr.mxu0 0.0
    %252 = vmatpush2.msra.mxu0 0.0
    %253 = vmatprep.subr.mxu0 0.0
    %254 = vmatpush2.msra.mxu0 0.0
    %255 = vmatprep.subr.mxu0 0.0
    %256 = vmatpush2.msra.mxu0 0.0
    %257 = vmatprep.subr.mxu0 0.0
    %258 = vmatpush2.msra.mxu0 0.0
    %259 = vmatprep.subr.mxu0 0.0
    %260 = vmatpush2.msra.mxu0 0.0
    %261 = vmatprep.subr.mxu0 0.0
    %262 = vmatpush2.msra.mxu0 0.0
    %263 = vmatprep.subr.mxu0 0.0
    %264 = vmatpush2.msra.mxu0 0.0
    %265 = vmatprep.mubr.f32.mxu0 0.0
    %v266 = vand.u32 %v45, 4294901760
    %v267 = vsub.f32 %v45, %v266
    %268 = vmatmul.mubr.f32.gmra.mxu0 %v267
    %v269 = vpop.f32.mrf.mxu0
    %v270 = vadd.f32 %v196, %v269
    %v271 = vpop.f32.mrf.mxu0
    %272 = vdwg.mxu0
    %273 = vmatprep.subr.mxu0 0.0
    %274 = vmatpush1.msra.mxu0 0.0
    %275 = vmatprep.subr.mxu0 0.0
    %276 = vmatpush1.msra.mxu0 0.0
    %277 = vmatprep.subr.mxu0 0.0
    %278 = vmatpush1.msra.mxu0 0.0
    %279 = vmatprep.subr.mxu0 0.0
    %280 = vmatpush1.msra.mxu0 0.0
    %281 = vmatprep.subr.mxu0 0.0
    %282 = vmatpush1.msra.mxu0 0.0
    %283 = vmatprep.subr.mxu0 0.0
    %284 = vmatpush1.msra.mxu0 0.0
    %285 = vmatprep.subr.mxu0 0.0
    %286 = vmatpush1.msra.mxu0 0.0
    %287 = vmatprep.subr.mxu0 0.0
    %288 = vmatpush1.msra.mxu0 0.0
    %289 = vmatprep.subr.mxu0 0.0
    %290 = vmatpush1.msra.mxu0 0.0
    %291 = vmatprep.subr.mxu0 0.0
    %292 = vmatpush1.msra.mxu0 0.0
    %293 = vmatprep.subr.mxu0 0.0
    %294 = vmatpush1.msra.mxu0 0.0
    %295 = vmatprep.subr.mxu0 0.0
    %296 = vmatpush1.msra.mxu0 0.0
    %297 = vmatprep.subr.mxu0 0.0
    %298 = vmatpush1.msra.mxu0 0.0
    %299 = vmatprep.subr.mxu0 0.0
    %300 = vmatpush1.msra.mxu0 0.0
    %301 = vmatprep.subr.mxu0 0.0
    %302 = vmatpush1.msra.mxu0 0.0
    %303 = vmatprep.subr.mxu0 0.0
    %v304 = vand.u32 %v41, 4294901760
    %305 = vmatpush1.msra.mxu0 %v304
    %306 = vmatprep.subr.mxu0 0.0
    %307 = vmatpush2.msra.mxu0 0.0
    %308 = vmatprep.subr.mxu0 0.0
    %309 = vmatpush2.msra.mxu0 0.0
    %310 = vmatprep.subr.mxu0 0.0
    %311 = vmatpush2.msra.mxu0 0.0
    %312 = vmatprep.subr.mxu0 0.0
    %313 = vmatpush2.msra.mxu0 0.0
    %314 = vmatprep.subr.mxu0 0.0
    %315 = vmatpush2.msra.mxu0 0.0
    %316 = vmatprep.subr.mxu0 0.0
    %317 = vmatpush2.msra.mxu0 0.0
    %318 = vmatprep.subr.mxu0 0.0
    %319 = vmatpush2.msra.mxu0 0.0
    %320 = vmatprep.subr.mxu0 0.0
    %321 = vmatpush2.msra.mxu0 0.0
    %322 = vmatprep.subr.mxu0 0.0
    %323 = vmatpush2.msra.mxu0 0.0
    %324 = vmatprep.subr.mxu0 0.0
    %325 = vmatpush2.msra.mxu0 0.0
    %326 = vmatprep.subr.mxu0 0.0
    %327 = vmatpush2.msra.mxu0 0.0
    %328 = vmatprep.subr.mxu0 0.0
    %329 = vmatpush2.msra.mxu0 0.0
    %330 = vmatprep.subr.mxu0 0.0
    %331 = vmatpush2.msra.mxu0 0.0
    %332 = vmatprep.subr.mxu0 0.0
    %333 = vmatpush2.msra.mxu0 0.0
    %334 = vmatprep.subr.mxu0 0.0
    %335 = vmatpush2.msra.mxu0 0.0
    %336 = vmatprep.subr.mxu0 0.0
    %337 = vmatpush2.msra.mxu0 0.0
    %338 = vmatprep.mubr.f32.mxu0 0.0
    %v339 = vand.u32 %v45, 4294901760
    %v340 = vsub.f32 %v45, %v339
    %v341 = vand.u32 %v340, 4294901760
    %342 = vmatmul.mubr.f32.gmra.mxu0 %v341
    %v343 = vpop.f32.mrf.mxu0
    %v344 = vadd.f32 %v270, %v343
    %v345 = vpop.f32.mrf.mxu0
    %346 = vdwg.mxu0
    %347 = vmatprep.subr.mxu0 0.0
    %348 = vmatpush1.msra.mxu0 0.0
    %349 = vmatprep.subr.mxu0 0.0
    %350 = vmatpush1.msra.mxu0 0.0
    %351 = vmatprep.subr.mxu0 0.0
    %352 = vmatpush1.msra.mxu0 0.0
    %353 = vmatprep.subr.mxu0 0.0
    %354 = vmatpush1.msra.mxu0 0.0
    %355 = vmatprep.subr.mxu0 0.0
    %356 = vmatpush1.msra.mxu0 0.0
    %357 = vmatprep.subr.mxu0 0.0
    %358 = vmatpush1.msra.mxu0 0.0
    %359 = vmatprep.subr.mxu0 0.0
    %360 = vmatpush1.msra.mxu0 0.0
    %361 = vmatprep.subr.mxu0 0.0
    %362 = vmatpush1.msra.mxu0 0.0
    %363 = vmatprep.subr.mxu0 0.0
    %364 = vmatpush1.msra.mxu0 0.0
    %365 = vmatprep.subr.mxu0 0.0
    %366 = vmatpush1.msra.mxu0 0.0
    %367 = vmatprep.subr.mxu0 0.0
    %368 = vmatpush1.msra.mxu0 0.0
    %369 = vmatprep.subr.mxu0 0.0
    %370 = vmatpush1.msra.mxu0 0.0
    %371 = vmatprep.subr.mxu0 0.0
    %372 = vmatpush1.msra.mxu0 0.0
    %373 = vmatprep.subr.mxu0 0.0
    %374 = vmatpush1.msra.mxu0 0.0
    %375 = vmatprep.subr.mxu0 0.0
    %376 = vmatpush1.msra.mxu0 0.0
    %377 = vmatprep.subr.mxu0 0.0
    %v378 = vand.u32 %v41, 4294901760
    %v379 = vsub.f32 %v41, %v378
    %v380 = vand.u32 %v379, 4294901760
    %381 = vmatpush1.msra.mxu0 %v380
    %382 = vmatprep.subr.mxu0 0.0
    %383 = vmatpush2.msra.mxu0 0.0
    %384 = vmatprep.subr.mxu0 0.0
    %385 = vmatpush2.msra.mxu0 0.0
    %386 = vmatprep.subr.mxu0 0.0
    %387 = vmatpush2.msra.mxu0 0.0
    %388 = vmatprep.subr.mxu0 0.0
    %389 = vmatpush2.msra.mxu0 0.0
    %390 = vmatprep.subr.mxu0 0.0
    %391 = vmatpush2.msra.mxu0 0.0
    %392 = vmatprep.subr.mxu0 0.0
    %393 = vmatpush2.msra.mxu0 0.0
    %394 = vmatprep.subr.mxu0 0.0
    %395 = vmatpush2.msra.mxu0 0.0
    %396 = vmatprep.subr.mxu0 0.0
    %397 = vmatpush2.msra.mxu0 0.0
    %398 = vmatprep.subr.mxu0 0.0
    %399 = vmatpush2.msra.mxu0 0.0
    %400 = vmatprep.subr.mxu0 0.0
    %401 = vmatpush2.msra.mxu0 0.0
    %402 = vmatprep.subr.mxu0 0.0
    %403 = vmatpush2.msra.mxu0 0.0
    %404 = vmatprep.subr.mxu0 0.0
    %405 = vmatpush2.msra.mxu0 0.0
    %406 = vmatprep.subr.mxu0 0.0
    %407 = vmatpush2.msra.mxu0 0.0
    %408 = vmatprep.subr.mxu0 0.0
    %409 = vmatpush2.msra.mxu0 0.0
    %410 = vmatprep.subr.mxu0 0.0
    %411 = vmatpush2.msra.mxu0 0.0
    %412 = vmatprep.subr.mxu0 0.0
    %413 = vmatpush2.msra.mxu0 0.0
    %414 = vmatprep.mubr.f32.mxu0 0.0
    %v415 = vand.u32 %v45, 4294901760
    %416 = vmatmul.mubr.f32.gmra.mxu0 %v415
    %v417 = vpop.f32.mrf.mxu0
    %v418 = vadd.f32 %v344, %v417
    %v419 = vpop.f32.mrf.mxu0
    %420 = vdwg.mxu0
    %421 = vmatprep.subr.mxu0 0.0
    %422 = vmatpush1.msra.mxu0 0.0
    %423 = vmatprep.subr.mxu0 0.0
    %424 = vmatpush1.msra.mxu0 0.0
    %425 = vmatprep.subr.mxu0 0.0
    %426 = vmatpush1.msra.mxu0 0.0
    %427 = vmatprep.subr.mxu0 0.0
    %428 = vmatpush1.msra.mxu0 0.0
    %429 = vmatprep.subr.mxu0 0.0
    %430 = vmatpush1.msra.mxu0 0.0
    %431 = vmatprep.subr.mxu0 0.0
    %432 = vmatpush1.msra.mxu0 0.0
    %433 = vmatprep.subr.mxu0 0.0
    %434 = vmatpush1.msra.mxu0 0.0
    %435 = vmatprep.subr.mxu0 0.0
    %436 = vmatpush1.msra.mxu0 0.0
    %437 = vmatprep.subr.mxu0 0.0
    %438 = vmatpush1.msra.mxu0 0.0
    %439 = vmatprep.subr.mxu0 0.0
    %440 = vmatpush1.msra.mxu0 0.0
    %441 = vmatprep.subr.mxu0 0.0
    %442 = vmatpush1.msra.mxu0 0.0
    %443 = vmatprep.subr.mxu0 0.0
    %444 = vmatpush1.msra.mxu0 0.0
    %445 = vmatprep.subr.mxu0 0.0
    %446 = vmatpush1.msra.mxu0 0.0
    %447 = vmatprep.subr.mxu0 0.0
    %448 = vmatpush1.msra.mxu0 0.0
    %449 = vmatprep.subr.mxu0 0.0
    %450 = vmatpush1.msra.mxu0 0.0
    %451 = vmatprep.subr.mxu0 0.0
    %v452 = vand.u32 %v41, 4294901760
    %453 = vmatpush1.msra.mxu0 %v452
    %454 = vmatprep.subr.mxu0 0.0
    %455 = vmatpush2.msra.mxu0 0.0
    %456 = vmatprep.subr.mxu0 0.0
    %457 = vmatpush2.msra.mxu0 0.0
    %458 = vmatprep.subr.mxu0 0.0
    %459 = vmatpush2.msra.mxu0 0.0
    %460 = vmatprep.subr.mxu0 0.0
    %461 = vmatpush2.msra.mxu0 0.0
    %462 = vmatprep.subr.mxu0 0.0
    %463 = vmatpush2.msra.mxu0 0.0
    %464 = vmatprep.subr.mxu0 0.0
    %465 = vmatpush2.msra.mxu0 0.0
    %466 = vmatprep.subr.mxu0 0.0
    %467 = vmatpush2.msra.mxu0 0.0
    %468 = vmatprep.subr.mxu0 0.0
    %469 = vmatpush2.msra.mxu0 0.0
    %470 = vmatprep.subr.mxu0 0.0
    %471 = vmatpush2.msra.mxu0 0.0
    %472 = vmatprep.subr.mxu0 0.0
    %473 = vmatpush2.msra.mxu0 0.0
    %474 = vmatprep.subr.mxu0 0.0
    %475 = vmatpush2.msra.mxu0 0.0
    %476 = vmatprep.subr.mxu0 0.0
    %477 = vmatpush2.msra.mxu0 0.0
    %478 = vmatprep.subr.mxu0 0.0
    %479 = vmatpush2.msra.mxu0 0.0
    %480 = vmatprep.subr.mxu0 0.0
    %481 = vmatpush2.msra.mxu0 0.0
    %482 = vmatprep.subr.mxu0 0.0
    %483 = vmatpush2.msra.mxu0 0.0
    %484 = vmatprep.subr.mxu0 0.0
    %485 = vmatpush2.msra.mxu0 0.0
    %486 = vmatprep.mubr.f32.mxu0 0.0
    %v487 = vand.u32 %v45, 4294901760
    %488 = vmatmul.mubr.f32.gmra.mxu0 %v487
    %v489 = vpop.f32.mrf.mxu0
    %v490 = vadd.f32 %v418, %v489
    %v491 = vpop.f32.mrf.mxu0
    %492 = vdwg.mxu0
    %v494 = vsel %vm43, %v38, 0
    %496 = vmatprep.subr.mxu0 0.0
    %497 = vmatpush1.msra.mxu0 0.0
    %498 = vmatprep.subr.mxu0 0.0
    %499 = vmatpush1.msra.mxu0 0.0
    %500 = vmatprep.subr.mxu0 0.0
    %501 = vmatpush1.msra.mxu0 0.0
    %502 = vmatprep.subr.mxu0 0.0
    %503 = vmatpush1.msra.mxu0 0.0
    %504 = vmatprep.subr.mxu0 0.0
    %505 = vmatpush1.msra.mxu0 0.0
    %506 = vmatprep.subr.mxu0 0.0
    %507 = vmatpush1.msra.mxu0 0.0
    %508 = vmatprep.subr.mxu0 0.0
    %509 = vmatpush1.msra.mxu0 0.0
    %510 = vmatprep.subr.mxu0 0.0
    %511 = vmatpush1.msra.mxu0 0.0
    %512 = vmatprep.subr.mxu0 0.0
    %513 = vmatpush1.msra.mxu0 0.0
    %514 = vmatprep.subr.mxu0 0.0
    %515 = vmatpush1.msra.mxu0 0.0
    %516 = vmatprep.subr.mxu0 0.0
    %517 = vmatpush1.msra.mxu0 0.0
    %518 = vmatprep.subr.mxu0 0.0
    %519 = vmatpush1.msra.mxu0 0.0
    %520 = vmatprep.subr.mxu0 0.0
    %521 = vmatpush1.msra.mxu0 0.0
    %522 = vmatprep.subr.mxu0 0.0
    %523 = vmatpush1.msra.mxu0 0.0
    %524 = vmatprep.subr.mxu0 0.0
    %525 = vmatpush1.msra.mxu0 0.0
    %526 = vmatprep.subr.mxu0 0.0
    %v527 = vand.u32 %v42, 4294901760
    %528 = vmatpush1.msra.mxu0 %v527
    %529 = vmatprep.subr.mxu0 0.0
    %530 = vmatpush2.msra.mxu0 0.0
    %531 = vmatprep.subr.mxu0 0.0
    %532 = vmatpush2.msra.mxu0 0.0
    %533 = vmatprep.subr.mxu0 0.0
    %534 = vmatpush2.msra.mxu0 0.0
    %535 = vmatprep.subr.mxu0 0.0
    %536 = vmatpush2.msra.mxu0 0.0
    %537 = vmatprep.subr.mxu0 0.0
    %538 = vmatpush2.msra.mxu0 0.0
    %539 = vmatprep.subr.mxu0 0.0
    %540 = vmatpush2.msra.mxu0 0.0
    %541 = vmatprep.subr.mxu0 0.0
    %542 = vmatpush2.msra.mxu0 0.0
    %543 = vmatprep.subr.mxu0 0.0
    %544 = vmatpush2.msra.mxu0 0.0
    %545 = vmatprep.subr.mxu0 0.0
    %546 = vmatpush2.msra.mxu0 0.0
    %547 = vmatprep.subr.mxu0 0.0
    %548 = vmatpush2.msra.mxu0 0.0
    %549 = vmatprep.subr.mxu0 0.0
    %550 = vmatpush2.msra.mxu0 0.0
    %551 = vmatprep.subr.mxu0 0.0
    %552 = vmatpush2.msra.mxu0 0.0
    %553 = vmatprep.subr.mxu0 0.0
    %554 = vmatpush2.msra.mxu0 0.0
    %555 = vmatprep.subr.mxu0 0.0
    %556 = vmatpush2.msra.mxu0 0.0
    %557 = vmatprep.subr.mxu0 0.0
    %558 = vmatpush2.msra.mxu0 0.0
    %559 = vmatprep.subr.mxu0 0.0
    %560 = vmatpush2.msra.mxu0 0.0
    %561 = vmatprep.mubr.f32.mxu0 0.0
    %v562 = vand.u32 %v494, 4294901760
    %v563 = vsub.f32 %v494, %v562
    %v564 = vand.u32 %v563, 4294901760
    %v565 = vsub.f32 %v563, %v564
    %v566 = vand.u32 %v565, 4294901760
    %567 = vmatmul.mubr.f32.gmra.mxu0 %v566
    %v568 = vpop.f32.mrf.mxu0
    %v569 = vadd.f32 0.0, %v568
    %v570 = vpop.f32.mrf.mxu0
    %571 = vdwg.mxu0
    %572 = vmatprep.subr.mxu0 0.0
    %573 = vmatpush1.msra.mxu0 0.0
    %574 = vmatprep.subr.mxu0 0.0
    %575 = vmatpush1.msra.mxu0 0.0
    %576 = vmatprep.subr.mxu0 0.0
    %577 = vmatpush1.msra.mxu0 0.0
    %578 = vmatprep.subr.mxu0 0.0
    %579 = vmatpush1.msra.mxu0 0.0
    %580 = vmatprep.subr.mxu0 0.0
    %581 = vmatpush1.msra.mxu0 0.0
    %582 = vmatprep.subr.mxu0 0.0
    %583 = vmatpush1.msra.mxu0 0.0
    %584 = vmatprep.subr.mxu0 0.0
    %585 = vmatpush1.msra.mxu0 0.0
    %586 = vmatprep.subr.mxu0 0.0
    %587 = vmatpush1.msra.mxu0 0.0
    %588 = vmatprep.subr.mxu0 0.0
    %589 = vmatpush1.msra.mxu0 0.0
    %590 = vmatprep.subr.mxu0 0.0
    %591 = vmatpush1.msra.mxu0 0.0
    %592 = vmatprep.subr.mxu0 0.0
    %593 = vmatpush1.msra.mxu0 0.0
    %594 = vmatprep.subr.mxu0 0.0
    %595 = vmatpush1.msra.mxu0 0.0
    %596 = vmatprep.subr.mxu0 0.0
    %597 = vmatpush1.msra.mxu0 0.0
    %598 = vmatprep.subr.mxu0 0.0
    %599 = vmatpush1.msra.mxu0 0.0
    %600 = vmatprep.subr.mxu0 0.0
    %601 = vmatpush1.msra.mxu0 0.0
    %602 = vmatprep.subr.mxu0 0.0
    %v603 = vand.u32 %v42, 4294901760
    %v604 = vsub.f32 %v42, %v603
    %v605 = vand.u32 %v604, 4294901760
    %v606 = vsub.f32 %v604, %v605
    %v607 = vand.u32 %v606, 4294901760
    %608 = vmatpush1.msra.mxu0 %v607
    %609 = vmatprep.subr.mxu0 0.0
    %610 = vmatpush2.msra.mxu0 0.0
    %611 = vmatprep.subr.mxu0 0.0
    %612 = vmatpush2.msra.mxu0 0.0
    %613 = vmatprep.subr.mxu0 0.0
    %614 = vmatpush2.msra.mxu0 0.0
    %615 = vmatprep.subr.mxu0 0.0
    %616 = vmatpush2.msra.mxu0 0.0
    %617 = vmatprep.subr.mxu0 0.0
    %618 = vmatpush2.msra.mxu0 0.0
    %619 = vmatprep.subr.mxu0 0.0
    %620 = vmatpush2.msra.mxu0 0.0
    %621 = vmatprep.subr.mxu0 0.0
    %622 = vmatpush2.msra.mxu0 0.0
    %623 = vmatprep.subr.mxu0 0.0
    %624 = vmatpush2.msra.mxu0 0.0
    %625 = vmatprep.subr.mxu0 0.0
    %626 = vmatpush2.msra.mxu0 0.0
    %627 = vmatprep.subr.mxu0 0.0
    %628 = vmatpush2.msra.mxu0 0.0
    %629 = vmatprep.subr.mxu0 0.0
    %630 = vmatpush2.msra.mxu0 0.0
    %631 = vmatprep.subr.mxu0 0.0
    %632 = vmatpush2.msra.mxu0 0.0
    %633 = vmatprep.subr.mxu0 0.0
    %634 = vmatpush2.msra.mxu0 0.0
    %635 = vmatprep.subr.mxu0 0.0
    %636 = vmatpush2.msra.mxu0 0.0
    %637 = vmatprep.subr.mxu0 0.0
    %638 = vmatpush2.msra.mxu0 0.0
    %639 = vmatprep.subr.mxu0 0.0
    %640 = vmatpush2.msra.mxu0 0.0
    %641 = vmatprep.mubr.f32.mxu0 0.0
    %v642 = vand.u32 %v494, 4294901760
    %643 = vmatmul.mubr.f32.gmra.mxu0 %v642
    %v644 = vpop.f32.mrf.mxu0
    %v645 = vadd.f32 %v569, %v644
    %v646 = vpop.f32.mrf.mxu0
    %647 = vdwg.mxu0
    %648 = vmatprep.subr.mxu0 0.0
    %649 = vmatpush1.msra.mxu0 0.0
    %650 = vmatprep.subr.mxu0 0.0
    %651 = vmatpush1.msra.mxu0 0.0
    %652 = vmatprep.subr.mxu0 0.0
    %653 = vmatpush1.msra.mxu0 0.0
    %654 = vmatprep.subr.mxu0 0.0
    %655 = vmatpush1.msra.mxu0 0.0
    %656 = vmatprep.subr.mxu0 0.0
    %657 = vmatpush1.msra.mxu0 0.0
    %658 = vmatprep.subr.mxu0 0.0
    %659 = vmatpush1.msra.mxu0 0.0
    %660 = vmatprep.subr.mxu0 0.0
    %661 = vmatpush1.msra.mxu0 0.0
    %662 = vmatprep.subr.mxu0 0.0
    %663 = vmatpush1.msra.mxu0 0.0
    %664 = vmatprep.subr.mxu0 0.0
    %665 = vmatpush1.msra.mxu0 0.0
    %666 = vmatprep.subr.mxu0 0.0
    %667 = vmatpush1.msra.mxu0 0.0
    %668 = vmatprep.subr.mxu0 0.0
    %669 = vmatpush1.msra.mxu0 0.0
    %670 = vmatprep.subr.mxu0 0.0
    %671 = vmatpush1.msra.mxu0 0.0
    %672 = vmatprep.subr.mxu0 0.0
    %673 = vmatpush1.msra.mxu0 0.0
    %674 = vmatprep.subr.mxu0 0.0
    %675 = vmatpush1.msra.mxu0 0.0
    %676 = vmatprep.subr.mxu0 0.0
    %677 = vmatpush1.msra.mxu0 0.0
    %678 = vmatprep.subr.mxu0 0.0
    %v679 = vand.u32 %v42, 4294901760
    %v680 = vsub.f32 %v42, %v679
    %681 = vmatpush1.msra.mxu0 %v680
    %682 = vmatprep.subr.mxu0 0.0
    %683 = vmatpush2.msra.mxu0 0.0
    %684 = vmatprep.subr.mxu0 0.0
    %685 = vmatpush2.msra.mxu0 0.0
    %686 = vmatprep.subr.mxu0 0.0
    %687 = vmatpush2.msra.mxu0 0.0
    %688 = vmatprep.subr.mxu0 0.0
    %689 = vmatpush2.msra.mxu0 0.0
    %690 = vmatprep.subr.mxu0 0.0
    %691 = vmatpush2.msra.mxu0 0.0
    %692 = vmatprep.subr.mxu0 0.0
    %693 = vmatpush2.msra.mxu0 0.0
    %694 = vmatprep.subr.mxu0 0.0
    %695 = vmatpush2.msra.mxu0 0.0
    %696 = vmatprep.subr.mxu0 0.0
    %697 = vmatpush2.msra.mxu0 0.0
    %698 = vmatprep.subr.mxu0 0.0
    %699 = vmatpush2.msra.mxu0 0.0
    %700 = vmatprep.subr.mxu0 0.0
    %701 = vmatpush2.msra.mxu0 0.0
    %702 = vmatprep.subr.mxu0 0.0
    %703 = vmatpush2.msra.mxu0 0.0
    %704 = vmatprep.subr.mxu0 0.0
    %705 = vmatpush2.msra.mxu0 0.0
    %706 = vmatprep.subr.mxu0 0.0
    %707 = vmatpush2.msra.mxu0 0.0
    %708 = vmatprep.subr.mxu0 0.0
    %709 = vmatpush2.msra.mxu0 0.0
    %710 = vmatprep.subr.mxu0 0.0
    %711 = vmatpush2.msra.mxu0 0.0
    %712 = vmatprep.subr.mxu0 0.0
    %713 = vmatpush2.msra.mxu0 0.0
    %714 = vmatprep.mubr.f32.mxu0 0.0
    %v715 = vand.u32 %v494, 4294901760
    %v716 = vsub.f32 %v494, %v715
    %717 = vmatmul.mubr.f32.gmra.mxu0 %v716
    %v718 = vpop.f32.mrf.mxu0
    %v719 = vadd.f32 %v645, %v718
    %v720 = vpop.f32.mrf.mxu0
    %721 = vdwg.mxu0
    %722 = vmatprep.subr.mxu0 0.0
    %723 = vmatpush1.msra.mxu0 0.0
    %724 = vmatprep.subr.mxu0 0.0
    %725 = vmatpush1.msra.mxu0 0.0
    %726 = vmatprep.subr.mxu0 0.0
    %727 = vmatpush1.msra.mxu0 0.0
    %728 = vmatprep.subr.mxu0 0.0
    %729 = vmatpush1.msra.mxu0 0.0
    %730 = vmatprep.subr.mxu0 0.0
    %731 = vmatpush1.msra.mxu0 0.0
    %732 = vmatprep.subr.mxu0 0.0
    %733 = vmatpush1.msra.mxu0 0.0
    %734 = vmatprep.subr.mxu0 0.0
    %735 = vmatpush1.msra.mxu0 0.0
    %736 = vmatprep.subr.mxu0 0.0
    %737 = vmatpush1.msra.mxu0 0.0
    %738 = vmatprep.subr.mxu0 0.0
    %739 = vmatpush1.msra.mxu0 0.0
    %740 = vmatprep.subr.mxu0 0.0
    %741 = vmatpush1.msra.mxu0 0.0
    %742 = vmatprep.subr.mxu0 0.0
    %743 = vmatpush1.msra.mxu0 0.0
    %744 = vmatprep.subr.mxu0 0.0
    %745 = vmatpush1.msra.mxu0 0.0
    %746 = vmatprep.subr.mxu0 0.0
    %747 = vmatpush1.msra.mxu0 0.0
    %748 = vmatprep.subr.mxu0 0.0
    %749 = vmatpush1.msra.mxu0 0.0
    %750 = vmatprep.subr.mxu0 0.0
    %751 = vmatpush1.msra.mxu0 0.0
    %752 = vmatprep.subr.mxu0 0.0
    %v753 = vand.u32 %v42, 4294901760
    %754 = vmatpush1.msra.mxu0 %v753
    %755 = vmatprep.subr.mxu0 0.0
    %756 = vmatpush2.msra.mxu0 0.0
    %757 = vmatprep.subr.mxu0 0.0
    %758 = vmatpush2.msra.mxu0 0.0
    %759 = vmatprep.subr.mxu0 0.0
    %760 = vmatpush2.msra.mxu0 0.0
    %761 = vmatprep.subr.mxu0 0.0
    %762 = vmatpush2.msra.mxu0 0.0
    %763 = vmatprep.subr.mxu0 0.0
    %764 = vmatpush2.msra.mxu0 0.0
    %765 = vmatprep.subr.mxu0 0.0
    %766 = vmatpush2.msra.mxu0 0.0
    %767 = vmatprep.subr.mxu0 0.0
    %768 = vmatpush2.msra.mxu0 0.0
    %769 = vmatprep.subr.mxu0 0.0
    %770 = vmatpush2.msra.mxu0 0.0
    %771 = vmatprep.subr.mxu0 0.0
    %772 = vmatpush2.msra.mxu0 0.0
    %773 = vmatprep.subr.mxu0 0.0
    %774 = vmatpush2.msra.mxu0 0.0
    %775 = vmatprep.subr.mxu0 0.0
    %776 = vmatpush2.msra.mxu0 0.0
    %777 = vmatprep.subr.mxu0 0.0
    %778 = vmatpush2.msra.mxu0 0.0
    %779 = vmatprep.subr.mxu0 0.0
    %780 = vmatpush2.msra.mxu0 0.0
    %781 = vmatprep.subr.mxu0 0.0
    %782 = vmatpush2.msra.mxu0 0.0
    %783 = vmatprep.subr.mxu0 0.0
    %784 = vmatpush2.msra.mxu0 0.0
    %785 = vmatprep.subr.mxu0 0.0
    %786 = vmatpush2.msra.mxu0 0.0
    %787 = vmatprep.mubr.f32.mxu0 0.0
    %v788 = vand.u32 %v494, 4294901760
    %v789 = vsub.f32 %v494, %v788
    %v790 = vand.u32 %v789, 4294901760
    %791 = vmatmul.mubr.f32.gmra.mxu0 %v790
    %v792 = vpop.f32.mrf.mxu0
    %v793 = vadd.f32 %v719, %v792
    %v794 = vpop.f32.mrf.mxu0
    %795 = vdwg.mxu0
    %796 = vmatprep.subr.mxu0 0.0
    %797 = vmatpush1.msra.mxu0 0.0
    %798 = vmatprep.subr.mxu0 0.0
    %799 = vmatpush1.msra.mxu0 0.0
    %800 = vmatprep.subr.mxu0 0.0
    %801 = vmatpush1.msra.mxu0 0.0
    %802 = vmatprep.subr.mxu0 0.0
    %803 = vmatpush1.msra.mxu0 0.0
    %804 = vmatprep.subr.mxu0 0.0
    %805 = vmatpush1.msra.mxu0 0.0
    %806 = vmatprep.subr.mxu0 0.0
    %807 = vmatpush1.msra.mxu0 0.0
    %808 = vmatprep.subr.mxu0 0.0
    %809 = vmatpush1.msra.mxu0 0.0
    %810 = vmatprep.subr.mxu0 0.0
    %811 = vmatpush1.msra.mxu0 0.0
    %812 = vmatprep.subr.mxu0 0.0
    %813 = vmatpush1.msra.mxu0 0.0
    %814 = vmatprep.subr.mxu0 0.0
    %815 = vmatpush1.msra.mxu0 0.0
    %816 = vmatprep.subr.mxu0 0.0
    %817 = vmatpush1.msra.mxu0 0.0
    %818 = vmatprep.subr.mxu0 0.0
    %819 = vmatpush1.msra.mxu0 0.0
    %820 = vmatprep.subr.mxu0 0.0
    %821 = vmatpush1.msra.mxu0 0.0
    %822 = vmatprep.subr.mxu0 0.0
    %823 = vmatpush1.msra.mxu0 0.0
    %824 = vmatprep.subr.mxu0 0.0
    %825 = vmatpush1.msra.mxu0 0.0
    %826 = vmatprep.subr.mxu0 0.0
    %v827 = vand.u32 %v42, 4294901760
    %v828 = vsub.f32 %v42, %v827
    %v829 = vand.u32 %v828, 4294901760
    %830 = vmatpush1.msra.mxu0 %v829
    %831 = vmatprep.subr.mxu0 0.0
    %832 = vmatpush2.msra.mxu0 0.0
    %833 = vmatprep.subr.mxu0 0.0
    %834 = vmatpush2.msra.mxu0 0.0
    %835 = vmatprep.subr.mxu0 0.0
    %836 = vmatpush2.msra.mxu0 0.0
    %837 = vmatprep.subr.mxu0 0.0
    %838 = vmatpush2.msra.mxu0 0.0
    %839 = vmatprep.subr.mxu0 0.0
    %840 = vmatpush2.msra.mxu0 0.0
    %841 = vmatprep.subr.mxu0 0.0
    %842 = vmatpush2.msra.mxu0 0.0
    %843 = vmatprep.subr.mxu0 0.0
    %844 = vmatpush2.msra.mxu0 0.0
    %845 = vmatprep.subr.mxu0 0.0
    %846 = vmatpush2.msra.mxu0 0.0
    %847 = vmatprep.subr.mxu0 0.0
    %848 = vmatpush2.msra.mxu0 0.0
    %849 = vmatprep.subr.mxu0 0.0
    %850 = vmatpush2.msra.mxu0 0.0
    %851 = vmatprep.subr.mxu0 0.0
    %852 = vmatpush2.msra.mxu0 0.0
    %853 = vmatprep.subr.mxu0 0.0
    %854 = vmatpush2.msra.mxu0 0.0
    %855 = vmatprep.subr.mxu0 0.0
    %856 = vmatpush2.msra.mxu0 0.0
    %857 = vmatprep.subr.mxu0 0.0
    %858 = vmatpush2.msra.mxu0 0.0
    %859 = vmatprep.subr.mxu0 0.0
    %860 = vmatpush2.msra.mxu0 0.0
    %861 = vmatprep.subr.mxu0 0.0
    %862 = vmatpush2.msra.mxu0 0.0
    %863 = vmatprep.mubr.f32.mxu0 0.0
    %v864 = vand.u32 %v494, 4294901760
    %865 = vmatmul.mubr.f32.gmra.mxu0 %v864
    %v866 = vpop.f32.mrf.mxu0
    %v867 = vadd.f32 %v793, %v866
    %v868 = vpop.f32.mrf.mxu0
    %869 = vdwg.mxu0
    %870 = vmatprep.subr.mxu0 0.0
    %871 = vmatpush1.msra.mxu0 0.0
    %872 = vmatprep.subr.mxu0 0.0
    %873 = vmatpush1.msra.mxu0 0.0
    %874 = vmatprep.subr.mxu0 0.0
    %875 = vmatpush1.msra.mxu0 0.0
    %876 = vmatprep.subr.mxu0 0.0
    %877 = vmatpush1.msra.mxu0 0.0
    %878 = vmatprep.subr.mxu0 0.0
    %879 = vmatpush1.msra.mxu0 0.0
    %880 = vmatprep.subr.mxu0 0.0
    %881 = vmatpush1.msra.mxu0 0.0
    %882 = vmatprep.subr.mxu0 0.0
    %883 = vmatpush1.msra.mxu0 0.0
    %884 = vmatprep.subr.mxu0 0.0
    %885 = vmatpush1.msra.mxu0 0.0
    %886 = vmatprep.subr.mxu0 0.0
    %887 = vmatpush1.msra.mxu0 0.0
    %888 = vmatprep.subr.mxu0 0.0
    %889 = vmatpush1.msra.mxu0 0.0
    %890 = vmatprep.subr.mxu0 0.0
    %891 = vmatpush1.msra.mxu0 0.0
    %892 = vmatprep.subr.mxu0 0.0
    %893 = vmatpush1.msra.mxu0 0.0
    %894 = vmatprep.subr.mxu0 0.0
    %895 = vmatpush1.msra.mxu0 0.0
    %896 = vmatprep.subr.mxu0 0.0
    %897 = vmatpush1.msra.mxu0 0.0
    %898 = vmatprep.subr.mxu0 0.0
    %899 = vmatpush1.msra.mxu0 0.0
    %900 = vmatprep.subr.mxu0 0.0
    %v901 = vand.u32 %v42, 4294901760
    %902 = vmatpush1.msra.mxu0 %v901
    %903 = vmatprep.subr.mxu0 0.0
    %904 = vmatpush2.msra.mxu0 0.0
    %905 = vmatprep.subr.mxu0 0.0
    %906 = vmatpush2.msra.mxu0 0.0
    %907 = vmatprep.subr.mxu0 0.0
    %908 = vmatpush2.msra.mxu0 0.0
    %909 = vmatprep.subr.mxu0 0.0
    %910 = vmatpush2.msra.mxu0 0.0
    %911 = vmatprep.subr.mxu0 0.0
    %912 = vmatpush2.msra.mxu0 0.0
    %913 = vmatprep.subr.mxu0 0.0
    %914 = vmatpush2.msra.mxu0 0.0
    %915 = vmatprep.subr.mxu0 0.0
    %916 = vmatpush2.msra.mxu0 0.0
    %917 = vmatprep.subr.mxu0 0.0
    %918 = vmatpush2.msra.mxu0 0.0
    %919 = vmatprep.subr.mxu0 0.0
    %920 = vmatpush2.msra.mxu0 0.0
    %921 = vmatprep.subr.mxu0 0.0
    %922 = vmatpush2.msra.mxu0 0.0
    %923 = vmatprep.subr.mxu0 0.0
    %924 = vmatpush2.msra.mxu0 0.0
    %925 = vmatprep.subr.mxu0 0.0
    %926 = vmatpush2.msra.mxu0 0.0
    %927 = vmatprep.subr.mxu0 0.0
    %928 = vmatpush2.msra.mxu0 0.0
    %929 = vmatprep.subr.mxu0 0.0
    %930 = vmatpush2.msra.mxu0 0.0
    %931 = vmatprep.subr.mxu0 0.0
    %932 = vmatpush2.msra.mxu0 0.0
    %933 = vmatprep.subr.mxu0 0.0
    %934 = vmatpush2.msra.mxu0 0.0
    %935 = vmatprep.mubr.f32.mxu0 0.0
    %v936 = vand.u32 %v494, 4294901760
    %937 = vmatmul.mubr.f32.gmra.mxu0 %v936
    %v938 = vpop.f32.mrf.mxu0
    %v939 = vadd.f32 %v867, %v938
    %v940 = vpop.f32.mrf.mxu0
    %941 = vdwg.mxu0
    %v942 = vadd.f32 %v39, %v490
    %v943 = vadd.f32 %v40, %v939
    %vm944 = vcmask 253952
    %945 = vst.msk [vmem:[#allocation2] sm:$0x1] %vm944, %v942
    %946 = vst.msk [vmem:[#allocation2 + $0x1] sm:$0x1] %vm944, %v943
    // Predicated region
    $region22: #{tpu_custom_call.1} parent=1 // pred_check
      %p947 = pneg %p30
    $region23: #{tpu_custom_call.1} parent=1 // pred_check_branch
      %949 = sbr.rel (%p947) target = $region25
    $region24: #{tpu_custom_call.1} parent=1 // pred_region
      %v950 = vld [vmem:[#allocation2] sm:$0x1]
      %v951 = vld [vmem:[#allocation2 + $0x1] sm:$0x1]
      %s952 = sld [smem:[#allocation3]]
      %v953 = vstv %s952
      %v954 = vmul.f32 %v950, %v953
      %v955 = vmul.f32 %v951, %v953
      %956 = vst.msk [vmem:[#allocation7] sm:$0x1] %vm944, %v954
      %957 = vst.msk [vmem:[#allocation7 + $0x1] sm:$0x1] %vm944, %v955
    $region25: #{tpu_custom_call.1} parent=1 // pred_fallthru
      _
    // Predicated region
    $region26: #{tpu_custom_call.1} parent=1 // pred_check
      _
    $region27: #{tpu_custom_call.1} parent=1 // pred_check_branch
      %959 = sbr.rel (0) target = $region29
    $region28: #{tpu_custom_call.1} parent=1 // pred_region
      %s961 = ssub.s32 32, 32
      %962 = vsyncadd [#allocation6], %s961
      %s963 = sshll.u32 [#allocation7], 4
      %s964 = int_to_ptr.vmem [resolvable:$true] %s963
      %969 = dma.vmem_to_hbm [thread:$0]  %s964, 32, %s3, [#allocation6], 16, 16, 1
    $region29: #{tpu_custom_call.1} parent=1 // pred_fallthru
      _
    // Predicated region
    $region30: #{tpu_custom_call.1} parent=1 // pred_check
      _
    $region31: #{tpu_custom_call.1} parent=1 // pred_check_branch
      %971 = sbr.rel (0) target = $region33
    $region32: #{tpu_custom_call.1} parent=1 // pred_region
      %972 = dma.done [#allocation6], 32
    $region33: #{tpu_custom_call.1} parent=1 // pred_fallthru
      _
    %973 = vsyncpa [#allocation5], 1
    %974 = vsyncpa [#allocation6], 1

</llo_original>
